<compile_context>
chip_gen: v7x
topology: tpu7x:2x2x1
jax: 0.10.0
libtpu: 0.0.40
codegen_flags: <defaults>
</compile_context>

<pallas_src>
import functools
import math

import jax
import jax.numpy as jnp
from jax import lax
from jax.experimental import pallas as pl
from jax.experimental.pallas import tpu as pltpu


def _self_attn_kernel(x_ref,      # (R, D)     activations (matmul dtype)
                      wqkv_ref,   # (D, 3*Wp)  fused, lane-aligned, pre-transposed weights
                      bqkv_ref,   # (1, 3*Wp)  fused, lane-aligned bias (f32)
                      key_ref,    # (1, R)     f32 mask key: batch id if valid else -1
                      o_ref,      # (R, Wp)    output, lane-dense (Wp = 128-padded width)
                      *, scale, w_pad):
    Wp = w_pad

    # Fused QKV projection: one (R, D) @ (D, 3*Wp) MXU matmul, f32 accumulation.
    qkv = jnp.dot(x_ref[...], wqkv_ref[...],
                  preferred_element_type=jnp.float32) + bqkv_ref[...]

    # Lane-aligned slices (offsets are multiples of 128).  Lanes >= W are zero
    # (zero-padded weights and bias) and contribute nothing downstream.
    q = qkv[:, 0 * Wp:1 * Wp]
    k = qkv[:, 1 * Wp:2 * Wp]
    v = qkv[:, 2 * Wp:3 * Wp]

    # scores[i, j] = <q_i, k_j> / sqrt(W); cross-batch / padded pairs masked below.
    scores = lax.dot_general(q, k, (((1,), (1,)), ((), ())),
                             preferred_element_type=jnp.float32)
    scores = scores * jnp.float32(scale)

    # Block-diagonal validity from a single lane-major key.  Keys are small exact
    # integers stored as f32; the (1,R)->(R,1) move is a cheap one-tile transpose.
    key_c = key_ref[...]                                        # (1, R)
    key_r = jnp.transpose(key_c)                                # (R, 1)
    valid = (key_r == key_c) & (key_c >= jnp.float32(0.0))      # (R, R)

    # Masked softmax matching SelfAttentionFCLayer.masked_softmax:
    # fill(-1e12) -> softmax -> * (1 - mask).
    masked = jnp.where(valid, scores, jnp.float32(-1e12))
    m = jnp.max(masked, axis=-1, keepdims=True)
    e = jnp.exp(masked - m)
    denom = jnp.sum(e, axis=-1, keepdims=True)                  # >= 1, never 0
    attn = e * pl.reciprocal(denom)                             # exact reciprocal
    attn = jnp.where(valid, attn, jnp.float32(0.0))             # * (1 - mask)

    # attn stays f32 (no R*R pack); MXU has plenty of slack at these shapes.
    out = jnp.dot(attn, v, preferred_element_type=jnp.float32)  # (R, Wp)
    o_ref[...] = out.astype(o_ref.dtype)                        # lane-dense store


def self_attention_fc(x, valid_lens, params, *,
                      matmul_dtype=jnp.float32, core_parallel=False):
    """Forward pass of SelfAttentionFCLayer.

    x            : (B, S, D) float32
    valid_lens   : (B,) or (B, 1) int — number of valid tokens per batch
    params       : wq/wk/wv of shape (W, D) (PyTorch nn.Linear layout), bq/bk/bv (W,)
    matmul_dtype : MXU operand dtype for the QKV projection (keep f32 on v5e;
                   bf16 only pays off on v6e/v7x at much larger S).
    core_parallel: set True on v7x to shard batch blocks across the 2 TensorCores.
    Returns (B, S, W).
    """
    B, S, D = x.shape
    W = params["wq"].shape[0]
    f32 = jnp.float32

    # ---- lane-aligned fused QKV weights: each projection occupies its own
    #      128-lane group, zero-padded beyond the real W columns ---------------
    Wp = -(-W // 128) * 128

    def prep_w(w):                                   # (W, D) -> (D, Wp)
        return jnp.pad(w.astype(f32).T, ((0, 0), (0, Wp - W)))

    def prep_b(b):                                   # (W,) -> (Wp,)
        return jnp.pad(b.astype(f32), (0, Wp - W))

    w_qkv = jnp.concatenate(
        [prep_w(params["wq"]), prep_w(params["wk"]), prep_w(params["wv"])],
        axis=1).astype(matmul_dtype)                 # (D, 3*Wp)
    b_qkv = jnp.concatenate(
        [prep_b(params["bq"]), prep_b(params["bk"]), prep_b(params["bv"])]
    ).reshape(1, 3 * Wp)                             # (1, 3*Wp) f32

    vl = jnp.asarray(valid_lens).reshape(-1).astype(jnp.int32)   # (B,)

    # ---- bounded row-block size: pad S up to a divisor of 128 (or a multiple
    #      of 128 for long sequences) so R is exactly a lane multiple, capped
    #      at 128 whenever S <= 128 ---------------------------------------------
    if S <= 128:
        S_pad = next(d for d in (8, 16, 32, 64, 128) if d >= S)
        Bt = 128 // S_pad
    else:
        S_pad = -(-S // 128) * 128
        Bt = 1
    R = Bt * S_pad
    # TODO(synk): for S in the hundreds+ tile the KV axis with an online-softmax
    # (flash) inner loop instead of materializing the (R, R) block; on v7x
    # (64 MiB VMEM) the switchover threshold is roughly half that of v5e/v6e.

    n_blocks = -(-B // Bt)
    if core_parallel and n_blocks % 2:
        n_blocks += 1                                # balance across the 2 TCs
    B_pad = n_blocks * Bt

    pad_b, pad_s = B_pad - B, S_pad - S
    if pad_b or pad_s:
        x = jnp.pad(x, ((0, pad_b), (0, pad_s), (0, 0)))
    if pad_b:
        vl = jnp.pad(vl, (0, pad_b))                 # padded batches: 0 valid rows
    x_flat = x.reshape(B_pad * S_pad, D).astype(matmul_dtype)

    # Single lane-major mask key: batch id where the position is valid, else -1.
    # Stored as f32 (small exact integers), so the in-kernel (1,R)->(R,1) move
    # is an ordinary f32 transpose.
    bid = jnp.arange(B_pad, dtype=jnp.int32)[:, None]            # (B_pad, 1)
    pos = jnp.arange(S_pad, dtype=jnp.int32)[None, :]            # (1, S_pad)
    key = jnp.where(pos < vl[:, None], bid, -1).astype(f32)
    key = key.reshape(1, B_pad * S_pad)

    # VMEM footprint: double-buffered inputs/outputs + live f32 temporaries
    # (qkv, q/k/v views, scores/masked/e/attn/valid, out).  2x safety margin,
    # floored well below any default scoped limit, capped at v7x's 64 MiB.
    isz = jnp.dtype(matmul_dtype).itemsize
    footprint = (2 * R * D * isz + 2 * D * 3 * Wp * isz + 2 * 3 * Wp * 4
                 + 2 * R * 4 + 2 * R * Wp * 4
                 + R * 3 * Wp * 4 + 4 * R * Wp * 4 + 6 * R * R * 4)
    vmem_limit = int(min(max(2 * footprint, 16 << 20), 64 << 20))

    grid_spec = pltpu.PrefetchScalarGridSpec(
        num_scalar_prefetch=0,
        grid=(n_blocks,),
        in_specs=[
            pl.BlockSpec((R, D), lambda i: (i, 0)),           # activations
            pl.BlockSpec((D, 3 * Wp), lambda i: (0, 0)),      # fused weights (resident)
            pl.BlockSpec((1, 3 * Wp), lambda i: (0, 0)),      # fused bias (resident)
            pl.BlockSpec((1, R), lambda i: (0, i)),           # mask key (lane-major)
        ],
        out_specs=pl.BlockSpec((R, Wp), lambda i: (i, 0)),    # lane-dense output
    )

    kernel = functools.partial(_self_attn_kernel,
                               scale=1.0 / math.sqrt(W), w_pad=Wp)

    out = pl.pallas_call(
        kernel,
        out_shape=jax.ShapeDtypeStruct((B_pad * S_pad, Wp), jnp.float32),
        grid_spec=grid_spec,
        compiler_params=pltpu.CompilerParams(
            # v7x: pass core_parallel=True so both TensorCores get batch blocks;
            # on single-TC v5e/v6e "parallel" is a no-op either way.
            dimension_semantics=(
                pltpu.CORE_PARALLEL if core_parallel else "parallel",),
            vmem_limit_bytes=vmem_limit),
    )(x_flat, w_qkv, b_qkv, key)

    # Strip padded batches / positions / lanes (wrapper-side layout plumbing only).
    return out.reshape(B_pad, S_pad, Wp)[:B, :S, :W]


def _reference(x, valid_lens, params):
    """Pure-JAX reference mirroring the PyTorch forward, for verification."""
    W = params["wq"].shape[0]
    q = x @ params["wq"].T + params["bq"]
    k = x @ params["wk"].T + params["bk"]
    v = x @ params["wv"].T + params["bv"]
    scores = jnp.einsum("bqd,bkd->bqk", q, k) / math.sqrt(W)
    vl = jnp.asarray(valid_lens).reshape(-1)
    S = scores.shape[1]
    row = jnp.arange(S)[None, :, None]
    col = jnp.arange(S)[None, None, :]
    mask = (col >= vl[:, None, None]) | (row >= vl[:, None, None])
    masked = jnp.where(mask, -1e12, scores)
    attn = jax.nn.softmax(masked, axis=-1) * (1.0 - mask.astype(jnp.float32))
    return jnp.einsum("bqk,bkd->bqd", attn, v)


if __name__ == "__main__":
    # Small shapes consistent with the module: input_size=16, graph_width=32,
    # seq=8 tokens, batch=24 (pads to 32 => grid of 2 blocks of 16 batches each,
    # R = 128 rows per block).
    B, S, D, W = 24, 8, 16, 32

    key = jax.random.PRNGKey(0)
    kx, kvl, kwq, kbq, kwk, kbk, kwv, kbv = jax.random.split(key, 8)

    x = jax.random.normal(kx, (B, S, D), dtype=jnp.float32)
    valid_lens = jax.random.randint(kvl, (B,), 1, S + 1, dtype=jnp.int32)

    bound = 1.0 / math.sqrt(D)  # nn.Linear default init range
    params = {
        "wq": jax.random.uniform(kwq, (W, D), jnp.float32, -bound, bound),
        "bq": jax.random.uniform(kbq, (W,), jnp.float32, -bound, bound),
        "wk": jax.random.uniform(kwk, (W, D), jnp.float32, -bound, bound),
        "bk": jax.random.uniform(kbk, (W,), jnp.float32, -bound, bound),
        "wv": jax.random.uniform(kwv, (W, D), jnp.float32, -bound, bound),
        "bv": jax.random.uniform(kbv, (W,), jnp.float32, -bound, bound),
    }

    run = jax.jit(self_attention_fc)
    out = jax.block_until_ready(run(x, valid_lens, params))

    ref = _reference(x, valid_lens, params)
    assert out.shape == (B, S, W)
    # Exact reciprocal restored -> tight tolerance again.
    assert jnp.allclose(out, ref, atol=1e-4, rtol=1e-4), "mismatch vs JAX reference"

    print("KERNEL_OK")
</pallas_src>

<mosaic_0001>
module attributes {stable_mosaic.version = 11 : i64} {
  func.func @_self_attn_kernel(%arg0: i32, %arg1: memref<128x16xf32, #tpu.memory_space<vmem>>, %arg2: memref<16x384xf32, #tpu.memory_space<vmem>>, %arg3: memref<1x384xf32, #tpu.memory_space<vmem>>, %arg4: memref<1x128xf32, #tpu.memory_space<vmem>>, %arg5: memref<128x128xf32, #tpu.memory_space<vmem>>) attributes {dimension_semantics = [#tpu.dimension_semantics<parallel>], iteration_bounds = array<i64: 2>, scalar_prefetch = 0 : i64, scratch_operands = 0 : i64, tpu.core_type = #tpu.core_type<tc>, window_params = [{transform_indices = @transform_0, window_bounds = array<i64: 128, 16>}, {pipeline_mode = #tpu.pipeline_mode<synchronous>, transform_indices = @transform_1, window_bounds = array<i64: 16, 384>}, {pipeline_mode = #tpu.pipeline_mode<synchronous>, transform_indices = @transform_2, window_bounds = array<i64: 1, 384>}, {transform_indices = @transform_3, window_bounds = array<i64: 1, 128>}, {transform_indices = @transform_4, window_bounds = array<i64: 128, 128>}]} {
    %c0 = arith.constant 0 : index
    %c0_0 = arith.constant 0 : index
    %0 = vector.load %arg1[%c0, %c0_0] : memref<128x16xf32, #tpu.memory_space<vmem>>, vector<128x16xf32>
    %c0_1 = arith.constant 0 : index
    %c0_2 = arith.constant 0 : index
    %1 = vector.load %arg2[%c0_1, %c0_2] : memref<16x384xf32, #tpu.memory_space<vmem>>, vector<16x384xf32>
    %cst = arith.constant dense<0.000000e+00> : vector<128x384xf32>
    %2 = tpu.matmul %0, %1, %cst {dimension_numbers = #tpu.dot_dimension_numbers<[1], [0], [0], [1], [0, 0, 1, 1], [], []>} : vector<128x16xf32>, vector<16x384xf32>, vector<128x384xf32> -> vector<128x384xf32>
    %c0_3 = arith.constant 0 : index
    %c0_4 = arith.constant 0 : index
    %3 = vector.load %arg3[%c0_3, %c0_4] : memref<1x384xf32, #tpu.memory_space<vmem>>, vector<1x384xf32>
    %4 = vector.broadcast %3 : vector<1x384xf32> to vector<128x384xf32>
    %5 = arith.addf %2, %4 : vector<128x384xf32>
    %6 = vector.extract_strided_slice %5 {offsets = [0, 0], sizes = [128, 128], strides = [1, 1]} : vector<128x384xf32> to vector<128x128xf32>
    %7 = vector.extract_strided_slice %5 {offsets = [0, 128], sizes = [128, 128], strides = [1, 1]} : vector<128x384xf32> to vector<128x128xf32>
    %8 = vector.extract_strided_slice %5 {offsets = [0, 256], sizes = [128, 128], strides = [1, 1]} : vector<128x384xf32> to vector<128x128xf32>
    %cst_5 = arith.constant dense<0.000000e+00> : vector<128x128xf32>
    %9 = tpu.matmul %6, %7, %cst_5 {dimension_numbers = #tpu.dot_dimension_numbers<[1], [1], [0], [0], [0, 0, 1, 0], [], []>} : vector<128x128xf32>, vector<128x128xf32>, vector<128x128xf32> -> vector<128x128xf32>
    %cst_6 = arith.constant 0.176776692 : f32
    %10 = vector.broadcast %cst_6 : f32 to vector<128x128xf32>
    %11 = arith.mulf %9, %10 : vector<128x128xf32>
    %c0_7 = arith.constant 0 : index
    %c0_8 = arith.constant 0 : index
    %12 = vector.load %arg4[%c0_7, %c0_8] : memref<1x128xf32, #tpu.memory_space<vmem>>, vector<1x128xf32>
    %13 = tpu.transpose %12, [1, 0] : vector<1x128xf32> -> vector<128x1xf32>
    %14 = vector.broadcast %13 : vector<128x1xf32> to vector<128x128xf32>
    %15 = vector.broadcast %12 : vector<1x128xf32> to vector<128x128xf32>
    %16 = arith.cmpf oeq, %14, %15 : vector<128x128xf32>
    %cst_9 = arith.constant 0.000000e+00 : f32
    %17 = vector.broadcast %cst_9 : f32 to vector<1x128xf32>
    %18 = arith.cmpf oge, %12, %17 : vector<1x128xf32>
    %19 = vector.broadcast %18 : vector<1x128xi1> to vector<128x128xi1>
    %20 = arith.andi %16, %19 : vector<128x128xi1>
    %cst_10 = arith.constant -9.99999995E+11 : f32
    %21 = vector.broadcast %cst_10 : f32 to vector<128x128xf32>
    %22 = arith.select %20, %11, %21 : vector<128x128xi1>, vector<128x128xf32>
    %cst_11 = arith.constant dense<0xFF800000> : vector<128xf32>
    %23 = vector.multi_reduction <maximumf>, %22, %cst_11 [1] : vector<128x128xf32> to vector<128xf32>
    %24 = vector.shape_cast %23 : vector<128xf32> to vector<128x1xf32>
    %25 = vector.broadcast %24 : vector<128x1xf32> to vector<128x128xf32>
    %26 = arith.subf %22, %25 : vector<128x128xf32>
    %27 = math.exp %26 : vector<128x128xf32>
    %cst_12 = arith.constant dense<0.000000e+00> : vector<128xf32>
    %28 = vector.multi_reduction <add>, %27, %cst_12 [1] : vector<128x128xf32> to vector<128xf32>
    %29 = vector.shape_cast %28 : vector<128xf32> to vector<128x1xf32>
    %30 = tpu.reciprocal %29 : vector<128x1xf32> -> vector<128x1xf32>
    %31 = vector.broadcast %30 : vector<128x1xf32> to vector<128x128xf32>
    %32 = arith.mulf %27, %31 : vector<128x128xf32>
    %cst_13 = arith.constant 0.000000e+00 : f32
    %33 = vector.broadcast %cst_13 : f32 to vector<128x128xf32>
    %34 = arith.select %20, %32, %33 : vector<128x128xi1>, vector<128x128xf32>
    %cst_14 = arith.constant dense<0.000000e+00> : vector<128x128xf32>
    %35 = tpu.matmul %34, %8, %cst_14 {dimension_numbers = #tpu.dot_dimension_numbers<[1], [0], [0], [1], [0, 0, 1, 1], [], []>} : vector<128x128xf32>, vector<128x128xf32>, vector<128x128xf32> -> vector<128x128xf32>
    %c0_15 = arith.constant 0 : index
    %c0_16 = arith.constant 0 : index
    %36 = vector.load %arg5[%c0_15, %c0_16] : memref<128x128xf32, #tpu.memory_space<vmem>>, vector<128x128xf32>
    tpu.vector_store %arg5[%c0_15, %c0_16], %35 {strides = array<i32>} : memref<128x128xf32, #tpu.memory_space<vmem>>, vector<128x128xf32>,
    return
  }
  func.func @transform_0(%arg0: i32) -> (i32, i32) {
    %c0_i32 = arith.constant 0 : i32
    %c0_i32_0 = arith.constant 0 : i32
    return %arg0, %c0_i32 : i32, i32
  }
  func.func @transform_1(%arg0: i32) -> (i32, i32) {
    %c0_i32 = arith.constant 0 : i32
    %c0_i32_0 = arith.constant 0 : i32
    %c0_i32_1 = arith.constant 0 : i32
    return %c0_i32, %c0_i32_0 : i32, i32
  }
  func.func @transform_2(%arg0: i32) -> (i32, i32) {
    %c0_i32 = arith.constant 0 : i32
    %c0_i32_0 = arith.constant 0 : i32
    %c0_i32_1 = arith.constant 0 : i32
    return %c0_i32, %c0_i32_0 : i32, i32
  }
  func.func @transform_3(%arg0: i32) -> (i32, i32) {
    %c0_i32 = arith.constant 0 : i32
    %c0_i32_0 = arith.constant 0 : i32
    return %c0_i32, %arg0 : i32, i32
  }
  func.func @transform_4(%arg0: i32) -> (i32, i32) {
    %c0_i32 = arith.constant 0 : i32
    %c0_i32_0 = arith.constant 0 : i32
    return %arg0, %c0_i32 : i32, i32
  }
}

</mosaic_0001>

<llo_original>
// kernel: self_attention_fc.1
$region0: #{self_attention_fc.1}
  #allocation0 [shape = 'u32[]', space=smem, size = 0x4, offset = 0x4, fixed_abs, tag = 'smem constant byte address 0x4 - core index']
  #allocation1 [shape = 'u32[144,128]{1,0:T(1,128)}', space=vmem, size = 0x12000, scoped, tag = 'internal scratch']
  %s0 = inlined_call_operand.vmem [shape: f32[256,16], index: 0, kind: input, shape index: {}]
  %s1 = inlined_call_operand.vmem [shape: f32[16,384], index: 1, kind: input, shape index: {}]
  %s2 = inlined_call_operand.vmem [shape: f32[1,384], index: 2, kind: input, shape index: {}]
  %s3 = inlined_call_operand.vmem [shape: f32[1,256], index: 3, kind: input, shape index: {}]
  %s4 = inlined_call_operand.vmem [shape: f32[256,128], index: 4, kind: output, shape index: {}]
  %s5 = sld [smem:[#allocation0]]
  $region49: #{self_attention_fc.1} parent=0
    _
  %s7 = ssub.s32 1, %s5
  %s8 = scalar_select 0, %s7, %s5
  loop: start=0, step=1, limit=4
  $region2: #{self_attention_fc.1} parent=0 // loop_pre_header
    _
  $region3: #{self_attention_fc.1} parent=0 // loop_header
    %s10 = sphi 0, %s14
    %p11 = scmp.ge.s32.totalorder %s10, 4
    %s20 = sphi 0, %s22
    %s23 = sphi 0, %s20
    %s24 = sphi 0, %s23
    %s40 = sphi 0, %s24
    %s44 = sphi 0, %s44
    %s46 = sphi 0, %s44
    %s47 = sphi 0, %s46
    %s61 = sphi 0, %s47
    %s65 = sphi 0, %s65
    %s67 = sphi 0, %s65
    %s68 = sphi 0, %s67
    %s82 = sphi 0, %s68
    %s88 = sphi 0, %s90
    %s91 = sphi 0, %s88
    %s92 = sphi 0, %s91
    %s108 = sphi 0, %s92
    %s114 = sphi 0, %s116
    %s117 = sphi 0, %s114
    %s118 = sphi 0, %s117
    %s134 = sphi 0, %s118
  $region4: #{self_attention_fc.1} parent=0 // loop_header_branch
    %13 = sbr.rel (%p11) target = $region8
  $region5: #{self_attention_fc.1} parent=0 // loop_body
    %s15 = ssub.s32 %s10, 1
    %s16 = ssub.s32 %s10, 2
    %s17 = sadd.s32 %s10, 1
    %s18 = ssub.s32 %s10, %s17
    %p19 = scmp.eq.s32.totalorder %s18, 0
    %s21 = sadd.s32 %s20, 1
    %s22 = scalar_select %p19, %s20, %s21
    %p25 = pneg %p19
    %p26 = scmp.eq.s32.totalorder %s10, 1
    %p27 = por %p25, %p26
    %p28 = scmp.ne.s32.totalorder %s20, %s23
    %p29 = scmp.eq.s32.totalorder %s10, 0
    %p30 = por %p28, %p29
    %p31 = scmp.ne.s32.totalorder %s20, %s23
    %p32 = scmp.eq.s32.totalorder %s15, 1
    %p33 = por %p31, %p32
    %p34 = scmp.ne.s32.totalorder %s23, %s24
    %p35 = scmp.eq.s32.totalorder %s15, 0
    %p36 = por %p34, %p35
    %p37 = scmp.ne.s32.totalorder %s23, %s24
    %p38 = scmp.eq.s32.totalorder %s16, 1
    %p39 = por %p37, %p38
    %p41 = scmp.ne.s32.totalorder %s24, %s40
    %p42 = scmp.eq.s32.totalorder %s16, 0
    %p43 = por %p41, %p42
    %s45 = sadd.s32 %s44, 1
    %p48 = scmp.eq.s32.totalorder %s10, 1
    %p49 = scmp.ne.s32.totalorder %s44, %s46
    %p50 = scmp.eq.s32.totalorder %s10, 0
    %p51 = por %p49, %p50
    %p52 = scmp.ne.s32.totalorder %s44, %s46
    %p53 = scmp.eq.s32.totalorder %s15, 1
    %p54 = por %p52, %p53
    %p55 = scmp.ne.s32.totalorder %s46, %s47
    %p56 = scmp.eq.s32.totalorder %s15, 0
    %p57 = por %p55, %p56
    %p58 = scmp.ne.s32.totalorder %s46, %s47
    %p59 = scmp.eq.s32.totalorder %s16, 1
    %p60 = por %p58, %p59
    %p62 = scmp.ne.s32.totalorder %s47, %s61
    %p63 = scmp.eq.s32.totalorder %s16, 0
    %p64 = por %p62, %p63
    %s66 = sadd.s32 %s65, 1
    %p69 = scmp.eq.s32.totalorder %s10, 1
    %p70 = scmp.ne.s32.totalorder %s65, %s67
    %p71 = scmp.eq.s32.totalorder %s10, 0
    %p72 = por %p70, %p71
    %p73 = scmp.ne.s32.totalorder %s65, %s67
    %p74 = scmp.eq.s32.totalorder %s15, 1
    %p75 = por %p73, %p74
    %p76 = scmp.ne.s32.totalorder %s67, %s68
    %p77 = scmp.eq.s32.totalorder %s15, 0
    %p78 = por %p76, %p77
    %p79 = scmp.ne.s32.totalorder %s67, %s68
    %p80 = scmp.eq.s32.totalorder %s16, 1
    %p81 = por %p79, %p80
    %p83 = scmp.ne.s32.totalorder %s68, %s82
    %p84 = scmp.eq.s32.totalorder %s16, 0
    %p85 = por %p83, %p84
    %s86 = ssub.s32 %s10, %s17
    %p87 = scmp.eq.s32.totalorder %s86, 0
    %s89 = sadd.s32 %s88, 1
    %s90 = scalar_select %p87, %s88, %s89
    %p93 = pneg %p87
    %p94 = scmp.eq.s32.totalorder %s10, 1
    %p95 = por %p93, %p94
    %p96 = scmp.ne.s32.totalorder %s88, %s91
    %p97 = scmp.eq.s32.totalorder %s10, 0
    %p98 = por %p96, %p97
    %p99 = scmp.ne.s32.totalorder %s88, %s91
    %p100 = scmp.eq.s32.totalorder %s15, 1
    %p101 = por %p99, %p100
    %p102 = scmp.ne.s32.totalorder %s91, %s92
    %p103 = scmp.eq.s32.totalorder %s15, 0
    %p104 = por %p102, %p103
    %p105 = scmp.ne.s32.totalorder %s91, %s92
    %p106 = scmp.eq.s32.totalorder %s16, 1
    %p107 = por %p105, %p106
    %p109 = scmp.ne.s32.totalorder %s92, %s108
    %p110 = scmp.eq.s32.totalorder %s16, 0
    %p111 = por %p109, %p110
    %s112 = ssub.s32 %s10, %s17
    %p113 = scmp.eq.s32.totalorder %s112, 0
    %s115 = sadd.s32 %s114, 1
    %s116 = scalar_select %p113, %s114, %s115
    %p119 = pneg %p113
    %p120 = scmp.eq.s32.totalorder %s10, 1
    %p121 = por %p119, %p120
    %p122 = scmp.ne.s32.totalorder %s114, %s117
    %p123 = scmp.eq.s32.totalorder %s10, 0
    %p124 = por %p122, %p123
    %p125 = scmp.ne.s32.totalorder %s114, %s117
    %p126 = scmp.eq.s32.totalorder %s15, 1
    %p127 = por %p125, %p126
    %p128 = scmp.ne.s32.totalorder %s117, %s118
    %p129 = scmp.eq.s32.totalorder %s15, 0
    %p130 = por %p128, %p129
    %p131 = scmp.ne.s32.totalorder %s117, %s118
    %p132 = scmp.eq.s32.totalorder %s16, 1
    %p133 = por %p131, %p132
    %p135 = scmp.ne.s32.totalorder %s118, %s134
    %p136 = scmp.eq.s32.totalorder %s16, 0
    %p137 = por %p135, %p136
    %p138 = scmp.le.s32.totalorder 1, %s10
    %p139 = scmp.lt.s32.totalorder %s10, 3
    %p140 = pnand %p138, %p139
    %p141 = pneg %p140
    // Predicated region
    $region9: #{self_attention_fc.1} parent=5 // pred_check
      _
    $region10: #{self_attention_fc.1} parent=5 // pred_check_branch
      %143 = sbr.rel (%p140) target = $region12
    $region11: #{self_attention_fc.1} parent=5 // pred_region
      %s144 = ssub.s32 %s10, 1
      // Predicated region
      $region13: #{self_attention_fc.1} parent=11 // pred_check
        %p145 = pneg %p57
      $region14: #{self_attention_fc.1} parent=11 // pred_check_branch
        %147 = sbr.rel (%p145) target = $region16
      $region15: #{self_attention_fc.1} parent=11 // pred_region
        _
      $region16: #{self_attention_fc.1} parent=11 // pred_fallthru
        _
      // Predicated region
      $region17: #{self_attention_fc.1} parent=11 // pred_check
        %p148 = pneg %p78
      $region18: #{self_attention_fc.1} parent=11 // pred_check_branch
        %150 = sbr.rel (%p148) target = $region20
      $region19: #{self_attention_fc.1} parent=11 // pred_region
        _
      $region20: #{self_attention_fc.1} parent=11 // pred_fallthru
        _
    $region12: #{self_attention_fc.1} parent=5 // pred_fallthru
      _
    %p151 = scmp.lt.s32.totalorder %s10, 2
    // Predicated region
    $region21: #{self_attention_fc.1} parent=5 // pred_check
      %p152 = pneg %p151
    $region22: #{self_attention_fc.1} parent=5 // pred_check_branch
      %154 = sbr.rel (%p152) target = $region24
    $region23: #{self_attention_fc.1} parent=5 // pred_region
      // Predicated region
      $region25: #{self_attention_fc.1} parent=23 // pred_check
        %p155 = pneg %p30
      $region26: #{self_attention_fc.1} parent=23 // pred_check_branch
        %157 = sbr.rel (%p155) target = $region28
      $region27: #{self_attention_fc.1} parent=23 // pred_region
        %s158 = smul.u32 16, %s10
        %p159 = scmp.lt.s32.totalorder %s158, 31
        %s160 = scalar_select %p159, %s158, 31
        %s161 = smul.addr %s160, 8
        %s162 = scalar_lea.vmem %s0, %s161
        %s163 = smul.u32 16, %s10
      $region28: #{self_attention_fc.1} parent=23 // pred_fallthru
        _
      // Predicated region
      $region29: #{self_attention_fc.1} parent=23 // pred_check
        %p164 = pneg %p98
      $region30: #{self_attention_fc.1} parent=23 // pred_check_branch
        %166 = sbr.rel (%p164) target = $region32
      $region31: #{self_attention_fc.1} parent=23 // pred_region
        %p167 = scmp.lt.s32.totalorder %s10, 1
        %s168 = scalar_select %p167, %s10, 1
        %s169 = scalar_lea.vmem %s3, %s168
      $region32: #{self_attention_fc.1} parent=23 // pred_fallthru
        _
    $region24: #{self_attention_fc.1} parent=5 // pred_fallthru
      _
    %p170 = scmp.le.s32.totalorder 1, %s10
    %p171 = scmp.lt.s32.totalorder %s10, 3
    %p172 = pnand %p170, %p171
    %p173 = pneg %p172
    // Predicated region
    $region33: #{self_attention_fc.1} parent=5 // pred_check
      _
    $region34: #{self_attention_fc.1} parent=5 // pred_check_branch
      %175 = sbr.rel (%p172) target = $region36
    $region35: #{self_attention_fc.1} parent=5 // pred_region
      %s176 = ssub.s32 %s10, 1
      %s177 = smul.u32 16, %s15
      %p178 = scmp.lt.s32.totalorder %s177, 31
      %s179 = scalar_select %p178, %s177, 31
      %s180 = smul.addr %s179, 8
      %s181 = scalar_lea.vmem %s0, %s180
      %p182 = pneg %p36
      %p183 = pneg %p33
      %p184 = pneg %p57
      %p185 = pneg %p54
      %p186 = pneg %p78
      %p187 = pneg %p75
      %p188 = scmp.lt.s32.totalorder %s15, 1
      %s189 = scalar_select %p188, %s15, 1
      %s190 = scalar_lea.vmem %s3, %s189
      %p191 = pneg %p104
      %p192 = pneg %p101
      %p193 = pneg %p130
      %p194 = pneg %p127
      %s195 = smul.u32 16, %s15
      %p196 = scmp.lt.s32.totalorder %s195, 31
      %s197 = scalar_select %p196, %s195, 31
      %s198 = smul.addr %s197, 8
      %s199 = scalar_lea.vmem %s4, %s198
      %s200 = smul.u32 16, %s15
      %p201 = scmp.lt.s32.totalorder %s200, 31
      %s202 = scalar_select %p201, %s200, 31
      %s203 = smul.addr %s202, 8
      %s204 = scalar_lea.vmem %s0, %s203
      %s205 = smul.u32 16, %s15
      %p206 = scmp.lt.s32.totalorder %s15, 1
      %s207 = scalar_select %p206, %s15, 1
      %s208 = scalar_lea.vmem %s3, %s207
      %s209 = smul.u32 16, %s15
      %p210 = scmp.lt.s32.totalorder %s209, 31
      %s211 = scalar_select %p210, %s209, 31
      %s212 = smul.addr %s211, 8
      %s213 = scalar_lea.vmem %s4, %s212
      %s214 = smul.u32 16, %s15
      %v215 = vld [vmem:[%s204] sm:$0xff]
      %v216 = vld [vmem:[%s204 + $0x8] sm:$0xff]
      %v217 = vld [vmem:[%s204 + $0x10] sm:$0xff]
      %v218 = vld [vmem:[%s204 + $0x18] sm:$0xff]
      %v219 = vld [vmem:[%s204 + $0x20] sm:$0xff]
      %v220 = vld [vmem:[%s204 + $0x28] sm:$0xff]
      %v221 = vld [vmem:[%s204 + $0x30] sm:$0xff]
      %v222 = vld [vmem:[%s204 + $0x38] sm:$0xff]
      %v223 = vld [vmem:[%s204 + $0x40] sm:$0xff]
      %v224 = vld [vmem:[%s204 + $0x48] sm:$0xff]
      %v225 = vld [vmem:[%s204 + $0x50] sm:$0xff]
      %v226 = vld [vmem:[%s204 + $0x58] sm:$0xff]
      %v227 = vld [vmem:[%s204 + $0x60] sm:$0xff]
      %v228 = vld [vmem:[%s204 + $0x68] sm:$0xff]
      %v229 = vld [vmem:[%s204 + $0x70] sm:$0xff]
      %v230 = vld [vmem:[%s204 + $0x78] sm:$0xff]
      %v231 = vld [vmem:[%s1] sm:$0xff]
      %v232 = vld [vmem:[%s1 + $0x8] sm:$0xff]
      %v233 = vld [vmem:[%s1 + $0x10] sm:$0xff]
      %v234 = vld [vmem:[%s1 + $0x18] sm:$0xff]
      %v235 = vld [vmem:[%s1 + $0x20] sm:$0xff]
      %v236 = vld [vmem:[%s1 + $0x28] sm:$0xff]
      %v237 = vld [vmem:[%s2] sm:$0x7]
      %v239 = vlaneseq
      %v240 = vshrl.u32 %v239, 7
      %v241 = vsub.s32 0, %v240
      %v242 = vrot.slane %v237, %v241
      %v243 = vlaneseq
      %v244 = vshrl.u32 %v243, 7
      %v245 = vsub.s32 1, %v244
      %v246 = vrot.slane %v237, %v245
      %v247 = vlaneseq
      %v248 = vshrl.u32 %v247, 7
      %v249 = vsub.s32 2, %v248
      %v250 = vrot.slane %v237, %v249
      %vm254 = vcmask 130048
      %v256 = vsel %vm254, %v215, 0
      %v259 = vsel %vm254, %v216, 0
      %v262 = vsel %vm254, %v217, 0
      %v265 = vsel %vm254, %v218, 0
      %v268 = vsel %vm254, %v219, 0
      %v271 = vsel %vm254, %v220, 0
      %v274 = vsel %vm254, %v221, 0
      %v277 = vsel %vm254, %v222, 0
      %v280 = vsel %vm254, %v223, 0
      %v283 = vsel %vm254, %v224, 0
      %v286 = vsel %vm254, %v225, 0
      %v289 = vsel %vm254, %v226, 0
      %v292 = vsel %vm254, %v227, 0
      %v295 = vsel %vm254, %v228, 0
      %v298 = vsel %vm254, %v229, 0
      %v301 = vsel %vm254, %v230, 0
      %303 = vmatprep.subr.mxu0 %v232
      %304 = vmatpush1.msra.mxu0 %v231
      %305 = vmatprep.subr.mxu0 %v235
      %306 = vmatpush1.msra.mxu0 %v234
      %307 = vmatprep.subr.mxu0 0.0
      %308 = vmatpush1.msra.mxu0 0.0
      %309 = vmatprep.subr.mxu0 0.0
      %310 = vmatpush1.msra.mxu0 0.0
      %311 = vmatprep.subr.mxu0 0.0
      %312 = vmatpush1.msra.mxu0 0.0
      %313 = vmatprep.subr.mxu0 0.0
      %314 = vmatpush1.msra.mxu0 0.0
      %315 = vmatprep.subr.mxu0 0.0
      %316 = vmatpush1.msra.mxu0 0.0
      %317 = vmatprep.subr.mxu0 0.0
      %318 = vmatpush1.msra.mxu0 0.0
      %319 = vmatprep.subr.mxu0 0.0
      %320 = vmatpush1.msra.mxu0 0.0
      %321 = vmatprep.subr.mxu0 0.0
      %322 = vmatpush1.msra.mxu0 0.0
      %323 = vmatprep.subr.mxu0 0.0
      %324 = vmatpush1.msra.mxu0 0.0
      %325 = vmatprep.subr.mxu0 0.0
      %326 = vmatpush1.msra.mxu0 0.0
      %327 = vmatprep.subr.mxu0 0.0
      %328 = vmatpush1.msra.mxu0 0.0
      %329 = vmatprep.subr.mxu0 0.0
      %330 = vmatpush1.msra.mxu0 0.0
      %331 = vmatprep.subr.mxu0 0.0
      %332 = vmatpush1.msra.mxu0 0.0
      %333 = vmatprep.subr.mxu0 0.0
      %334 = vmatpush1.msra.mxu0 0.0
      %335 = vmatprep.subr.mxu0 0.0
      %336 = vmatpush1.msra.mxu0 0.0
      %337 = vmatprep.subr.mxu0 0.0
      %338 = vmatpush1.msra.mxu0 0.0
      %339 = vmatprep.subr.mxu0 0.0
      %340 = vmatpush1.msra.mxu0 0.0
      %341 = vmatprep.subr.mxu0 0.0
      %342 = vmatpush1.msra.mxu0 0.0
      %343 = vmatprep.subr.mxu0 0.0
      %344 = vmatpush1.msra.mxu0 0.0
      %345 = vmatprep.subr.mxu0 0.0
      %346 = vmatpush1.msra.mxu0 0.0
      %347 = vmatprep.subr.mxu0 0.0
      %348 = vmatpush1.msra.mxu0 0.0
      %349 = vmatprep.subr.mxu0 0.0
      %350 = vmatpush1.msra.mxu0 0.0
      %351 = vmatprep.subr.mxu0 0.0
      %352 = vmatpush1.msra.mxu0 0.0
      %353 = vmatprep.subr.mxu0 0.0
      %354 = vmatpush1.msra.mxu0 0.0
      %355 = vmatprep.subr.mxu0 0.0
      %356 = vmatpush1.msra.mxu0 0.0
      %357 = vmatprep.subr.mxu0 0.0
      %358 = vmatpush1.msra.mxu0 0.0
      %359 = vmatprep.subr.mxu0 0.0
      %360 = vmatpush1.msra.mxu0 0.0
      %361 = vmatprep.subr.mxu0 0.0
      %362 = vmatpush1.msra.mxu0 0.0
      %363 = vmatprep.subr.mxu0 0.0
      %364 = vmatpush1.msra.mxu0 0.0
      %365 = vmatprep.subr.mxu0 0.0
      %366 = vmatpush1.msra.mxu0 0.0
      %367 = vmatprep.mubr.f32.mxu0 0.0
      %368 = vmatmul.mubr.f32.gmra.mrb[0].mxu0 %v256
      %v369 = vpop.f32.mrb[0].mxu0
      %v370 = vadd.f32 %v242, %v369
      %v371 = vpop.f32.mrb[0].mxu0
      %v372 = vadd.f32 %v246, %v371
      %373 = vmatprep.mubr.f32.mxu0 0.0
      %374 = vmatmul.mubr.f32.gmra.mrb[0].mxu0 %v259
      %v375 = vpop.f32.mrb[0].mxu0
      %v376 = vadd.f32 %v242, %v375
      %v377 = vpop.f32.mrb[0].mxu0
      %v378 = vadd.f32 %v246, %v377
      %379 = vmatprep.mubr.f32.mxu0 0.0
      %380 = vmatmul.mubr.f32.gmra.mrb[0].mxu0 %v262
      %v381 = vpop.f32.mrb[0].mxu0
      %v382 = vadd.f32 %v242, %v381
      %v383 = vpop.f32.mrb[0].mxu0
      %v384 = vadd.f32 %v246, %v383
      %385 = vmatprep.mubr.f32.mxu0 0.0
      %386 = vmatmul.mubr.f32.gmra.mrb[0].mxu0 %v265
      %v387 = vpop.f32.mrb[0].mxu0
      %v388 = vadd.f32 %v242, %v387
      %v389 = vpop.f32.mrb[0].mxu0
      %v390 = vadd.f32 %v246, %v389
      %391 = vmatprep.mubr.f32.mxu0 0.0
      %392 = vmatmul.mubr.f32.gmra.mrb[0].mxu0 %v268
      %v393 = vpop.f32.mrb[0].mxu0
      %v394 = vadd.f32 %v242, %v393
      %v395 = vpop.f32.mrb[0].mxu0
      %v396 = vadd.f32 %v246, %v395
      %397 = vmatprep.mubr.f32.mxu0 0.0
      %398 = vmatmul.mubr.f32.gmra.mrb[0].mxu0 %v271
      %v399 = vpop.f32.mrb[0].mxu0
      %v400 = vadd.f32 %v242, %v399
      %v401 = vpop.f32.mrb[0].mxu0
      %v402 = vadd.f32 %v246, %v401
      %403 = vmatprep.mubr.f32.mxu0 0.0
      %404 = vmatmul.mubr.f32.gmra.mrb[0].mxu0 %v274
      %v405 = vpop.f32.mrb[0].mxu0
      %v406 = vadd.f32 %v242, %v405
      %v407 = vpop.f32.mrb[0].mxu0
      %v408 = vadd.f32 %v246, %v407
      %409 = vmatprep.mubr.f32.mxu0 0.0
      %410 = vmatmul.mubr.f32.gmra.mrb[0].mxu0 %v277
      %v411 = vpop.f32.mrb[0].mxu0
      %v412 = vadd.f32 %v242, %v411
      %v413 = vpop.f32.mrb[0].mxu0
      %v414 = vadd.f32 %v246, %v413
      %415 = vmatprep.mubr.f32.mxu0 0.0
      %416 = vmatmul.mubr.f32.gmra.mrb[0].mxu0 %v280
      %v417 = vpop.f32.mrb[0].mxu0
      %v418 = vadd.f32 %v242, %v417
      %v419 = vpop.f32.mrb[0].mxu0
      %v420 = vadd.f32 %v246, %v419
      %421 = vmatprep.mubr.f32.mxu0 0.0
      %422 = vmatmul.mubr.f32.gmra.mrb[0].mxu0 %v283
      %v423 = vpop.f32.mrb[0].mxu0
      %v424 = vadd.f32 %v242, %v423
      %v425 = vpop.f32.mrb[0].mxu0
      %v426 = vadd.f32 %v246, %v425
      %427 = vmatprep.mubr.f32.mxu0 0.0
      %428 = vmatmul.mubr.f32.gmra.mrb[0].mxu0 %v286
      %v429 = vpop.f32.mrb[0].mxu0
      %v430 = vadd.f32 %v242, %v429
      %v431 = vpop.f32.mrb[0].mxu0
      %v432 = vadd.f32 %v246, %v431
      %433 = vmatprep.mubr.f32.mxu0 0.0
      %434 = vmatmul.mubr.f32.gmra.mrb[0].mxu0 %v289
      %v435 = vpop.f32.mrb[0].mxu0
      %v436 = vadd.f32 %v242, %v435
      %v437 = vpop.f32.mrb[0].mxu0
      %v438 = vadd.f32 %v246, %v437
      %439 = vmatprep.mubr.f32.mxu0 0.0
      %440 = vmatmul.mubr.f32.gmra.mrb[0].mxu0 %v292
      %v441 = vpop.f32.mrb[0].mxu0
      %v442 = vadd.f32 %v242, %v441
      %v443 = vpop.f32.mrb[0].mxu0
      %v444 = vadd.f32 %v246, %v443
      %445 = vmatprep.mubr.f32.mxu0 0.0
      %446 = vmatmul.mubr.f32.gmra.mrb[0].mxu0 %v295
      %v447 = vpop.f32.mrb[0].mxu0
      %v448 = vadd.f32 %v242, %v447
      %v449 = vpop.f32.mrb[0].mxu0
      %v450 = vadd.f32 %v246, %v449
      %451 = vmatprep.mubr.f32.mxu0 0.0
      %452 = vmatmul.mubr.f32.gmra.mrb[0].mxu0 %v298
      %v453 = vpop.f32.mrb[0].mxu0
      %v454 = vadd.f32 %v242, %v453
      %v455 = vpop.f32.mrb[0].mxu0
      %v456 = vadd.f32 %v246, %v455
      %457 = vmatprep.mubr.f32.mxu0 0.0
      %458 = vmatmul.mubr.f32.gmra.mrb[0].mxu0 %v301
      %v459 = vpop.f32.mrb[0].mxu0
      %v460 = vadd.f32 %v242, %v459
      %v461 = vpop.f32.mrb[0].mxu0
      %v462 = vadd.f32 %v246, %v461
      %463 = vdwg.mxu0
      %464 = vmatprep.subr.mxu0 0.0
      %465 = vmatpush1.msra.mxu0 %v233
      %466 = vmatprep.subr.mxu0 0.0
      %467 = vmatpush1.msra.mxu0 %v236
      %468 = vmatprep.subr.mxu0 0.0
      %469 = vmatpush1.msra.mxu0 0.0
      %470 = vmatprep.subr.mxu0 0.0
      %471 = vmatpush1.msra.mxu0 0.0
      %472 = vmatprep.subr.mxu0 0.0
      %473 = vmatpush1.msra.mxu0 0.0
      %474 = vmatprep.subr.mxu0 0.0
      %475 = vmatpush1.msra.mxu0 0.0
      %476 = vmatprep.subr.mxu0 0.0
      %477 = vmatpush1.msra.mxu0 0.0
      %478 = vmatprep.subr.mxu0 0.0
      %479 = vmatpush1.msra.mxu0 0.0
      %480 = vmatprep.subr.mxu0 0.0
      %481 = vmatpush1.msra.mxu0 0.0
      %482 = vmatprep.subr.mxu0 0.0
      %483 = vmatpush1.msra.mxu0 0.0
      %484 = vmatprep.subr.mxu0 0.0
      %485 = vmatpush1.msra.mxu0 0.0
      %486 = vmatprep.subr.mxu0 0.0
      %487 = vmatpush1.msra.mxu0 0.0
      %488 = vmatprep.subr.mxu0 0.0
      %489 = vmatpush1.msra.mxu0 0.0
      %490 = vmatprep.subr.mxu0 0.0
      %491 = vmatpush1.msra.mxu0 0.0
      %492 = vmatprep.subr.mxu0 0.0
      %493 = vmatpush1.msra.mxu0 0.0
      %494 = vmatprep.subr.mxu0 0.0
      %495 = vmatpush1.msra.mxu0 0.0
      %496 = vmatprep.subr.mxu0 0.0
      %497 = vmatpush1.msra.mxu0 0.0
      %498 = vmatprep.subr.mxu0 0.0
      %499 = vmatpush1.msra.mxu0 0.0
      %500 = vmatprep.subr.mxu0 0.0
      %501 = vmatpush1.msra.mxu0 0.0
      %502 = vmatprep.subr.mxu0 0.0
      %503 = vmatpush1.msra.mxu0 0.0
      %504 = vmatprep.subr.mxu0 0.0
      %505 = vmatpush1.msra.mxu0 0.0
      %506 = vmatprep.subr.mxu0 0.0
      %507 = vmatpush1.msra.mxu0 0.0
      %508 = vmatprep.subr.mxu0 0.0
      %509 = vmatpush1.msra.mxu0 0.0
      %510 = vmatprep.subr.mxu0 0.0
      %511 = vmatpush1.msra.mxu0 0.0
      %512 = vmatprep.subr.mxu0 0.0
      %513 = vmatpush1.msra.mxu0 0.0
      %514 = vmatprep.subr.mxu0 0.0
      %515 = vmatpush1.msra.mxu0 0.0
      %516 = vmatprep.subr.mxu0 0.0
      %517 = vmatpush1.msra.mxu0 0.0
      %518 = vmatprep.subr.mxu0 0.0
      %519 = vmatpush1.msra.mxu0 0.0
      %520 = vmatprep.subr.mxu0 0.0
      %521 = vmatpush1.msra.mxu0 0.0
      %522 = vmatprep.subr.mxu0 0.0
      %523 = vmatpush1.msra.mxu0 0.0
      %524 = vmatprep.subr.mxu0 0.0
      %525 = vmatpush1.msra.mxu0 0.0
      %526 = vmatprep.subr.mxu0 0.0
      %527 = vmatpush1.msra.mxu0 0.0
      %528 = vmatprep.mubr.f32.mxu0 0.0
      %529 = vmatmul.mubr.f32.gmra.mrb[0].mxu0 %v256
      %v530 = vpop.f32.mrb[0].mxu0
      %v531 = vadd.f32 %v250, %v530
      %v532 = vpop.f32.mrb[0].mxu0
      %533 = vmatprep.mubr.f32.mxu0 0.0
      %534 = vmatmul.mubr.f32.gmra.mrb[0].mxu0 %v259
      %v535 = vpop.f32.mrb[0].mxu0
      %v536 = vadd.f32 %v250, %v535
      %v537 = vpop.f32.mrb[0].mxu0
      %538 = vmatprep.mubr.f32.mxu0 0.0
      %539 = vmatmul.mubr.f32.gmra.mrb[0].mxu0 %v262
      %v540 = vpop.f32.mrb[0].mxu0
      %v541 = vadd.f32 %v250, %v540
      %v542 = vpop.f32.mrb[0].mxu0
      %543 = vmatprep.mubr.f32.mxu0 0.0
      %544 = vmatmul.mubr.f32.gmra.mrb[0].mxu0 %v265
      %v545 = vpop.f32.mrb[0].mxu0
      %v546 = vadd.f32 %v250, %v545
      %v547 = vpop.f32.mrb[0].mxu0
      %548 = vmatprep.mubr.f32.mxu0 0.0
      %549 = vmatmul.mubr.f32.gmra.mrb[0].mxu0 %v268
      %v550 = vpop.f32.mrb[0].mxu0
      %v551 = vadd.f32 %v250, %v550
      %v552 = vpop.f32.mrb[0].mxu0
      %553 = vmatprep.mubr.f32.mxu0 0.0
      %554 = vmatmul.mubr.f32.gmra.mrb[0].mxu0 %v271
      %v555 = vpop.f32.mrb[0].mxu0
      %v556 = vadd.f32 %v250, %v555
      %v557 = vpop.f32.mrb[0].mxu0
      %558 = vmatprep.mubr.f32.mxu0 0.0
      %559 = vmatmul.mubr.f32.gmra.mrb[0].mxu0 %v274
      %v560 = vpop.f32.mrb[0].mxu0
      %v561 = vadd.f32 %v250, %v560
      %v562 = vpop.f32.mrb[0].mxu0
      %563 = vmatprep.mubr.f32.mxu0 0.0
      %564 = vmatmul.mubr.f32.gmra.mrb[0].mxu0 %v277
      %v565 = vpop.f32.mrb[0].mxu0
      %v566 = vadd.f32 %v250, %v565
      %v567 = vpop.f32.mrb[0].mxu0
      %568 = vmatprep.mubr.f32.mxu0 0.0
      %569 = vmatmul.mubr.f32.gmra.mrb[0].mxu0 %v280
      %v570 = vpop.f32.mrb[0].mxu0
      %v571 = vadd.f32 %v250, %v570
      %v572 = vpop.f32.mrb[0].mxu0
      %573 = vmatprep.mubr.f32.mxu0 0.0
      %574 = vmatmul.mubr.f32.gmra.mrb[0].mxu0 %v283
      %v575 = vpop.f32.mrb[0].mxu0
      %v576 = vadd.f32 %v250, %v575
      %v577 = vpop.f32.mrb[0].mxu0
      %578 = vmatprep.mubr.f32.mxu0 0.0
      %579 = vmatmul.mubr.f32.gmra.mrb[0].mxu0 %v286
      %v580 = vpop.f32.mrb[0].mxu0
      %v581 = vadd.f32 %v250, %v580
      %v582 = vpop.f32.mrb[0].mxu0
      %583 = vmatprep.mubr.f32.mxu0 0.0
      %584 = vmatmul.mubr.f32.gmra.mrb[0].mxu0 %v289
      %v585 = vpop.f32.mrb[0].mxu0
      %v586 = vadd.f32 %v250, %v585
      %v587 = vpop.f32.mrb[0].mxu0
      %588 = vmatprep.mubr.f32.mxu0 0.0
      %589 = vmatmul.mubr.f32.gmra.mrb[0].mxu0 %v292
      %v590 = vpop.f32.mrb[0].mxu0
      %v591 = vadd.f32 %v250, %v590
      %v592 = vpop.f32.mrb[0].mxu0
      %593 = vmatprep.mubr.f32.mxu0 0.0
      %594 = vmatmul.mubr.f32.gmra.mrb[0].mxu0 %v295
      %v595 = vpop.f32.mrb[0].mxu0
      %v596 = vadd.f32 %v250, %v595
      %v597 = vpop.f32.mrb[0].mxu0
      %598 = vmatprep.mubr.f32.mxu0 0.0
      %599 = vmatmul.mubr.f32.gmra.mrb[0].mxu0 %v298
      %v600 = vpop.f32.mrb[0].mxu0
      %v601 = vadd.f32 %v250, %v600
      %v602 = vpop.f32.mrb[0].mxu0
      %603 = vmatprep.mubr.f32.mxu0 0.0
      %604 = vmatmul.mubr.f32.gmra.mrb[0].mxu0 %v301
      %v605 = vpop.f32.mrb[0].mxu0
      %v606 = vadd.f32 %v250, %v605
      %v607 = vpop.f32.mrb[0].mxu0
      %608 = vdwg.mxu0
      %609 = vmatprep.subr.mxu0 0.0
      %610 = vmatpush1.xpose.msra.mxu0 %v372
      %611 = vmatprep.subr.mxu0 0.0
      %612 = vmatpush1.xpose.msra.mxu0 %v378
      %613 = vmatprep.subr.mxu0 0.0
      %614 = vmatpush1.xpose.msra.mxu0 %v384
      %615 = vmatprep.subr.mxu0 0.0
      %616 = vmatpush1.xpose.msra.mxu0 %v390
      %617 = vmatprep.subr.mxu0 0.0
      %618 = vmatpush1.xpose.msra.mxu0 %v396
      %619 = vmatprep.subr.mxu0 0.0
      %620 = vmatpush1.xpose.msra.mxu0 %v402
      %621 = vmatprep.subr.mxu0 0.0
      %622 = vmatpush1.xpose.msra.mxu0 %v408
      %623 = vmatprep.subr.mxu0 0.0
      %624 = vmatpush1.xpose.msra.mxu0 %v414
      %625 = vmatprep.subr.mxu0 0.0
      %626 = vmatpush1.xpose.msra.mxu0 %v420
      %627 = vmatprep.subr.mxu0 0.0
      %628 = vmatpush1.xpose.msra.mxu0 %v426
      %629 = vmatprep.subr.mxu0 0.0
      %630 = vmatpush1.xpose.msra.mxu0 %v432
      %631 = vmatprep.subr.mxu0 0.0
      %632 = vmatpush1.xpose.msra.mxu0 %v438
      %633 = vmatprep.subr.mxu0 0.0
      %634 = vmatpush1.xpose.msra.mxu0 %v444
      %635 = vmatprep.subr.mxu0 0.0
      %636 = vmatpush1.xpose.msra.mxu0 %v450
      %637 = vmatprep.subr.mxu0 0.0
      %638 = vmatpush1.xpose.msra.mxu0 %v456
      %639 = vmatprep.subr.mxu0 0.0
      %640 = vmatpush1.xpose.msra.mxu0 %v462
      %641 = vmatprep.subr.mxu0 0.0
      %642 = vmatpush1.xpose.msra.mxu0 0.0
      %643 = vmatprep.subr.mxu0 0.0
      %644 = vmatpush1.xpose.msra.mxu0 0.0
      %645 = vmatprep.subr.mxu0 0.0
      %646 = vmatpush1.xpose.msra.mxu0 0.0
      %647 = vmatprep.subr.mxu0 0.0
      %648 = vmatpush1.xpose.msra.mxu0 0.0
      %649 = vmatprep.subr.mxu0 0.0
      %650 = vmatpush1.xpose.msra.mxu0 0.0
      %651 = vmatprep.subr.mxu0 0.0
      %652 = vmatpush1.xpose.msra.mxu0 0.0
      %653 = vmatprep.subr.mxu0 0.0
      %654 = vmatpush1.xpose.msra.mxu0 0.0
      %655 = vmatprep.subr.mxu0 0.0
      %656 = vmatpush1.xpose.msra.mxu0 0.0
      %657 = vmatprep.subr.mxu0 0.0
      %658 = vmatpush1.xpose.msra.mxu0 0.0
      %659 = vmatprep.subr.mxu0 0.0
      %660 = vmatpush1.xpose.msra.mxu0 0.0
      %661 = vmatprep.subr.mxu0 0.0
      %662 = vmatpush1.xpose.msra.mxu0 0.0
      %663 = vmatprep.subr.mxu0 0.0
      %664 = vmatpush1.xpose.msra.mxu0 0.0
      %665 = vmatprep.subr.mxu0 0.0
      %666 = vmatpush1.xpose.msra.mxu0 0.0
      %667 = vmatprep.subr.mxu0 0.0
      %668 = vmatpush1.xpose.msra.mxu0 0.0
      %669 = vmatprep.subr.mxu0 0.0
      %670 = vmatpush1.xpose.msra.mxu0 0.0
      %671 = vmatprep.subr.mxu0 0.0
      %672 = vmatpush1.xpose.msra.mxu0 0.0
      %673 = vmatprep.mubr.f32.mxu0 0.0
      %674 = vmatmul.mubr.f32.gmra.mrb[0].mxu0 %v370
      %v675 = vpop.f32.mrb[0].mxu0
      %v676 = vadd.f32 0.0, %v675
      %v677 = vpop.f32.mrb[0].mxu0
      %678 = vmatprep.mubr.f32.mxu0 0.0
      %679 = vmatmul.mubr.f32.gmra.mrb[0].mxu0 %v376
      %v680 = vpop.f32.mrb[0].mxu0
      %v681 = vadd.f32 0.0, %v680
      %v682 = vpop.f32.mrb[0].mxu0
      %683 = vmatprep.mubr.f32.mxu0 0.0
      %684 = vmatmul.mubr.f32.gmra.mrb[0].mxu0 %v382
      %v685 = vpop.f32.mrb[0].mxu0
      %v686 = vadd.f32 0.0, %v685
      %v687 = vpop.f32.mrb[0].mxu0
      %688 = vmatprep.mubr.f32.mxu0 0.0
      %689 = vmatmul.mubr.f32.gmra.mrb[0].mxu0 %v388
      %v690 = vpop.f32.mrb[0].mxu0
      %v691 = vadd.f32 0.0, %v690
      %v692 = vpop.f32.mrb[0].mxu0
      %693 = vmatprep.mubr.f32.mxu0 0.0
      %694 = vmatmul.mubr.f32.gmra.mrb[0].mxu0 %v394
      %v695 = vpop.f32.mrb[0].mxu0
      %v696 = vadd.f32 0.0, %v695
      %v697 = vpop.f32.mrb[0].mxu0
      %698 = vmatprep.mubr.f32.mxu0 0.0
      %699 = vmatmul.mubr.f32.gmra.mrb[0].mxu0 %v400
      %v700 = vpop.f32.mrb[0].mxu0
      %v701 = vadd.f32 0.0, %v700
      %v702 = vpop.f32.mrb[0].mxu0
      %703 = vmatprep.mubr.f32.mxu0 0.0
      %704 = vmatmul.mubr.f32.gmra.mrb[0].mxu0 %v406
      %v705 = vpop.f32.mrb[0].mxu0
      %v706 = vadd.f32 0.0, %v705
      %v707 = vpop.f32.mrb[0].mxu0
      %708 = vmatprep.mubr.f32.mxu0 0.0
      %709 = vmatmul.mubr.f32.gmra.mrb[0].mxu0 %v412
      %v710 = vpop.f32.mrb[0].mxu0
      %v711 = vadd.f32 0.0, %v710
      %v712 = vpop.f32.mrb[0].mxu0
      %713 = vmatprep.mubr.f32.mxu0 0.0
      %714 = vmatmul.mubr.f32.gmra.mrb[0].mxu0 %v418
      %v715 = vpop.f32.mrb[0].mxu0
      %v716 = vadd.f32 0.0, %v715
      %v717 = vpop.f32.mrb[0].mxu0
      %718 = vmatprep.mubr.f32.mxu0 0.0
      %719 = vmatmul.mubr.f32.gmra.mrb[0].mxu0 %v424
      %v720 = vpop.f32.mrb[0].mxu0
      %v721 = vadd.f32 0.0, %v720
      %v722 = vpop.f32.mrb[0].mxu0
      %723 = vmatprep.mubr.f32.mxu0 0.0
      %724 = vmatmul.mubr.f32.gmra.mrb[0].mxu0 %v430
      %v725 = vpop.f32.mrb[0].mxu0
      %v726 = vadd.f32 0.0, %v725
      %v727 = vpop.f32.mrb[0].mxu0
      %728 = vmatprep.mubr.f32.mxu0 0.0
      %729 = vmatmul.mubr.f32.gmra.mrb[0].mxu0 %v436
      %v730 = vpop.f32.mrb[0].mxu0
      %v731 = vadd.f32 0.0, %v730
      %v732 = vpop.f32.mrb[0].mxu0
      %733 = vmatprep.mubr.f32.mxu0 0.0
      %734 = vmatmul.mubr.f32.gmra.mrb[0].mxu0 %v442
      %v735 = vpop.f32.mrb[0].mxu0
      %v736 = vadd.f32 0.0, %v735
      %v737 = vpop.f32.mrb[0].mxu0
      %738 = vmatprep.mubr.f32.mxu0 0.0
      %739 = vmatmul.mubr.f32.gmra.mrb[0].mxu0 %v448
      %v740 = vpop.f32.mrb[0].mxu0
      %v741 = vadd.f32 0.0, %v740
      %v742 = vpop.f32.mrb[0].mxu0
      %743 = vmatprep.mubr.f32.mxu0 0.0
      %744 = vmatmul.mubr.f32.gmra.mrb[0].mxu0 %v454
      %v745 = vpop.f32.mrb[0].mxu0
      %v746 = vadd.f32 0.0, %v745
      %v747 = vpop.f32.mrb[0].mxu0
      %748 = vmatprep.mubr.f32.mxu0 0.0
      %749 = vmatmul.mubr.f32.gmra.mrb[0].mxu0 %v460
      %v750 = vpop.f32.mrb[0].mxu0
      %v751 = vadd.f32 0.0, %v750
      %v752 = vpop.f32.mrb[0].mxu0
      %753 = vdwg.mxu0
      %v754 = vmul.f32 %v676, 0.17677669
      %v755 = vmul.f32 %v681, 0.17677669
      %v756 = vmul.f32 %v686, 0.17677669
      %v757 = vmul.f32 %v691, 0.17677669
      %v758 = vmul.f32 %v696, 0.17677669
      %v759 = vmul.f32 %v701, 0.17677669
      %v760 = vmul.f32 %v706, 0.17677669
      %v761 = vmul.f32 %v711, 0.17677669
      %v762 = vmul.f32 %v716, 0.17677669
      %v763 = vmul.f32 %v721, 0.17677669
      %v764 = vmul.f32 %v726, 0.17677669
      %v765 = vmul.f32 %v731, 0.17677669
      %v766 = vmul.f32 %v736, 0.17677669
      %v767 = vmul.f32 %v741, 0.17677669
      %v768 = vmul.f32 %v746, 0.17677669
      %v769 = vmul.f32 %v751, 0.17677669
      %v770 = vld [vmem:[%s208] sm:$0x1]
      %771 = vxpose.xlu0.b32.start [1/16] %v770, 128
      %772 = vxpose.xlu0.b32.cont [2/16] 0.0, 128
      %773 = vxpose.xlu0.b32.cont [3/16] 0.0, 128
      %774 = vxpose.xlu0.b32.cont [4/16] 0.0, 128
      %775 = vxpose.xlu0.b32.cont [5/16] 0.0, 128
      %776 = vxpose.xlu0.b32.cont [6/16] 0.0, 128
      %777 = vxpose.xlu0.b32.cont [7/16] 0.0, 128
      %778 = vxpose.xlu0.b32.cont [8/16] 0.0, 128
      %779 = vxpose.xlu0.b32.cont [9/16] 0.0, 128
      %780 = vxpose.xlu0.b32.cont [10/16] 0.0, 128
      %781 = vxpose.xlu0.b32.cont [11/16] 0.0, 128
      %782 = vxpose.xlu0.b32.cont [12/16] 0.0, 128
      %783 = vxpose.xlu0.b32.cont [13/16] 0.0, 128
      %784 = vxpose.xlu0.b32.cont [14/16] 0.0, 128
      %785 = vxpose.xlu0.b32.cont [15/16] 0.0, 128
      %786 = vxpose.xlu0.b32.end [16/16] 0.0, 128
      %v787 = vpop.trf.xlu0
      %v788 = vpop.trf.xlu0
      %v789 = vpop.trf.xlu0
      %v790 = vpop.trf.xlu0
      %v791 = vpop.trf.xlu0
      %v792 = vpop.trf.xlu0
      %v793 = vpop.trf.xlu0
      %v794 = vpop.trf.xlu0
      %v795 = vpop.trf.xlu0
      %v796 = vpop.trf.xlu0
      %v797 = vpop.trf.xlu0
      %v798 = vpop.trf.xlu0
      %v799 = vpop.trf.xlu0
      %v800 = vpop.trf.xlu0
      %v801 = vpop.trf.xlu0
      %v802 = vpop.trf.xlu0
      %804 = vset.pattern.permute.xlu0 0
      %805 = vperm.xlu0 %804, %v787
      %v806 = vpop.permute.xlu0 %805
      %809 = vset.pattern.permute.xlu0 0
      %810 = vperm.xlu0 %809, %v788
      %v811 = vpop.permute.xlu0 %810
      %814 = vset.pattern.permute.xlu0 0
      %815 = vperm.xlu0 %814, %v789
      %v816 = vpop.permute.xlu0 %815
      %819 = vset.pattern.permute.xlu0 0
      %820 = vperm.xlu0 %819, %v790
      %v821 = vpop.permute.xlu0 %820
      %824 = vset.pattern.permute.xlu0 0
      %825 = vperm.xlu0 %824, %v791
      %v826 = vpop.permute.xlu0 %825
      %829 = vset.pattern.permute.xlu0 0
      %830 = vperm.xlu0 %829, %v792
      %v831 = vpop.permute.xlu0 %830
      %834 = vset.pattern.permute.xlu0 0
      %835 = vperm.xlu0 %834, %v793
      %v836 = vpop.permute.xlu0 %835
      %839 = vset.pattern.permute.xlu0 0
      %840 = vperm.xlu0 %839, %v794
      %v841 = vpop.permute.xlu0 %840
      %844 = vset.pattern.permute.xlu0 0
      %845 = vperm.xlu0 %844, %v795
      %v846 = vpop.permute.xlu0 %845
      %849 = vset.pattern.permute.xlu0 0
      %850 = vperm.xlu0 %849, %v796
      %v851 = vpop.permute.xlu0 %850
      %854 = vset.pattern.permute.xlu0 0
      %855 = vperm.xlu0 %854, %v797
      %v856 = vpop.permute.xlu0 %855
      %859 = vset.pattern.permute.xlu0 0
      %860 = vperm.xlu0 %859, %v798
      %v861 = vpop.permute.xlu0 %860
      %864 = vset.pattern.permute.xlu0 0
      %865 = vperm.xlu0 %864, %v799
      %v866 = vpop.permute.xlu0 %865
      %869 = vset.pattern.permute.xlu0 0
      %870 = vperm.xlu0 %869, %v800
      %v871 = vpop.permute.xlu0 %870
      %874 = vset.pattern.permute.xlu0 0
      %875 = vperm.xlu0 %874, %v801
      %v876 = vpop.permute.xlu0 %875
      %879 = vset.pattern.permute.xlu0 0
      %880 = vperm.xlu0 %879, %v802
      %v881 = vpop.permute.xlu0 %880
      %v884 = vlaneseq
      %v885 = vshrl.u32 %v884, 7
      %v886 = vsub.s32 0, %v885
      %v887 = vrot.slane %v770, %v886
      %vm889 = vcmp.eq.f32.partialorder %v806, %v887
      %vm890 = vcmp.eq.f32.partialorder %v811, %v887
      %vm891 = vcmp.eq.f32.partialorder %v816, %v887
      %vm892 = vcmp.eq.f32.partialorder %v821, %v887
      %vm893 = vcmp.eq.f32.partialorder %v826, %v887
      %vm894 = vcmp.eq.f32.partialorder %v831, %v887
      %vm895 = vcmp.eq.f32.partialorder %v836, %v887
      %vm896 = vcmp.eq.f32.partialorder %v841, %v887
      %vm897 = vcmp.eq.f32.partialorder %v846, %v887
      %vm898 = vcmp.eq.f32.partialorder %v851, %v887
      %vm899 = vcmp.eq.f32.partialorder %v856, %v887
      %vm900 = vcmp.eq.f32.partialorder %v861, %v887
      %vm901 = vcmp.eq.f32.partialorder %v866, %v887
      %vm902 = vcmp.eq.f32.partialorder %v871, %v887
      %vm903 = vcmp.eq.f32.partialorder %v876, %v887
      %vm904 = vcmp.eq.f32.partialorder %v881, %v887
      %vm905 = vcmp.ge.f32.partialorder %v770, 0.0
      %v906 = vsel %vm905, 1, 0
      %v907 = vlaneseq
      %v908 = vshrl.u32 %v907, 7
      %v909 = vsub.s32 0, %v908
      %v910 = vrot.slane %v906, %v909
      %vm911 = vcmp.eq.s32.totalorder %v910, 1
      %vm912 = vmand %vm889, %vm911
      %vm913 = vmand %vm890, %vm911
      %vm914 = vmand %vm891, %vm911
      %vm915 = vmand %vm892, %vm911
      %vm916 = vmand %vm893, %vm911
      %vm917 = vmand %vm894, %vm911
      %vm918 = vmand %vm895, %vm911
      %vm919 = vmand %vm896, %vm911
      %vm920 = vmand %vm897, %vm911
      %vm921 = vmand %vm898, %vm911
      %vm922 = vmand %vm899, %vm911
      %vm923 = vmand %vm900, %vm911
      %vm924 = vmand %vm901, %vm911
      %vm925 = vmand %vm902, %vm911
      %vm926 = vmand %vm903, %vm911
      %vm927 = vmand %vm904, %vm911
      %v928 = vsel %vm912, %v754, -1e+12
      %v929 = vsel %vm913, %v755, -1e+12
      %v930 = vsel %vm914, %v756, -1e+12
      %v931 = vsel %vm915, %v757, -1e+12
      %v932 = vsel %vm916, %v758, -1e+12
      %v933 = vsel %vm917, %v759, -1e+12
      %v934 = vsel %vm918, %v760, -1e+12
      %v935 = vsel %vm919, %v761, -1e+12
      %v936 = vsel %vm920, %v762, -1e+12
      %v937 = vsel %vm921, %v763, -1e+12
      %v938 = vsel %vm922, %v764, -1e+12
      %v939 = vsel %vm923, %v765, -1e+12
      %v940 = vsel %vm924, %v766, -1e+12
      %v941 = vsel %vm925, %v767, -1e+12
      %v942 = vsel %vm926, %v768, -1e+12
      %v943 = vsel %vm927, %v769, -1e+12
      %944 = vmax.xlane.f32.xlu0 %v928
      %v945 = vpop.xlane.xlu0 %944
      %946 = vmax.xlane.f32.xlu0 %v929
      %v947 = vpop.xlane.xlu0 %946
      %948 = vmax.xlane.f32.xlu0 %v930
      %v949 = vpop.xlane.xlu0 %948
      %950 = vmax.xlane.f32.xlu0 %v931
      %v951 = vpop.xlane.xlu0 %950
      %952 = vmax.xlane.f32.xlu0 %v932
      %v953 = vpop.xlane.xlu0 %952
      %954 = vmax.xlane.f32.xlu0 %v933
      %v955 = vpop.xlane.xlu0 %954
      %956 = vmax.xlane.f32.xlu0 %v934
      %v957 = vpop.xlane.xlu0 %956
      %958 = vmax.xlane.f32.xlu0 %v935
      %v959 = vpop.xlane.xlu0 %958
      %960 = vmax.xlane.f32.xlu0 %v936
      %v961 = vpop.xlane.xlu0 %960
      %962 = vmax.xlane.f32.xlu0 %v937
      %v963 = vpop.xlane.xlu0 %962
      %964 = vmax.xlane.f32.xlu0 %v938
      %v965 = vpop.xlane.xlu0 %964
      %966 = vmax.xlane.f32.xlu0 %v939
      %v967 = vpop.xlane.xlu0 %966
      %968 = vmax.xlane.f32.xlu0 %v940
      %v969 = vpop.xlane.xlu0 %968
      %970 = vmax.xlane.f32.xlu0 %v941
      %v971 = vpop.xlane.xlu0 %970
      %972 = vmax.xlane.f32.xlu0 %v942
      %v973 = vpop.xlane.xlu0 %972
      %974 = vmax.xlane.f32.xlu0 %v943
      %v975 = vpop.xlane.xlu0 %974
      %v976 = vsub.f32 %v928, %v945
      %v977 = vsub.f32 %v929, %v947
      %v978 = vsub.f32 %v930, %v949
      %v979 = vsub.f32 %v931, %v951
      %v980 = vsub.f32 %v932, %v953
      %v981 = vsub.f32 %v933, %v955
      %v982 = vsub.f32 %v934, %v957
      %v983 = vsub.f32 %v935, %v959
      %v984 = vsub.f32 %v936, %v961
      %v985 = vsub.f32 %v937, %v963
      %v986 = vsub.f32 %v938, %v965
      %v987 = vsub.f32 %v939, %v967
      %v988 = vsub.f32 %v940, %v969
      %v989 = vsub.f32 %v941, %v971
      %v990 = vsub.f32 %v942, %v973
      %v991 = vsub.f32 %v943, %v975
      %v992 = vmul.f32 %v976, 1.442695
      %v993 = vpow.pop %v992
      %v994 = vmul.f32 %v977, 1.442695
      %v995 = vpow.pop %v994
      %v996 = vmul.f32 %v978, 1.442695
      %v997 = vpow.pop %v996
      %v998 = vmul.f32 %v979, 1.442695
      %v999 = vpow.pop %v998
      %v1000 = vmul.f32 %v980, 1.442695
      %v1001 = vpow.pop %v1000
      %v1002 = vmul.f32 %v981, 1.442695
      %v1003 = vpow.pop %v1002
      %v1004 = vmul.f32 %v982, 1.442695
      %v1005 = vpow.pop %v1004
      %v1006 = vmul.f32 %v983, 1.442695
      %v1007 = vpow.pop %v1006
      %v1008 = vmul.f32 %v984, 1.442695
      %v1009 = vpow.pop %v1008
      %v1010 = vmul.f32 %v985, 1.442695
      %v1011 = vpow.pop %v1010
      %v1012 = vmul.f32 %v986, 1.442695
      %v1013 = vpow.pop %v1012
      %v1014 = vmul.f32 %v987, 1.442695
      %v1015 = vpow.pop %v1014
      %v1016 = vmul.f32 %v988, 1.442695
      %v1017 = vpow.pop %v1016
      %v1018 = vmul.f32 %v989, 1.442695
      %v1019 = vpow.pop %v1018
      %v1020 = vmul.f32 %v990, 1.442695
      %v1021 = vpow.pop %v1020
      %v1022 = vmul.f32 %v991, 1.442695
      %v1023 = vpow.pop %v1022
      %1024 = vadd.xlane.f32.xlu0 %v993
      %v1025 = vpop.xlane.xlu0 %1024
      %1026 = vadd.xlane.f32.xlu0 %v995
      %v1027 = vpop.xlane.xlu0 %1026
      %1028 = vadd.xlane.f32.xlu0 %v997
      %v1029 = vpop.xlane.xlu0 %1028
      %1030 = vadd.xlane.f32.xlu0 %v999
      %v1031 = vpop.xlane.xlu0 %1030
      %1032 = vadd.xlane.f32.xlu0 %v1001
      %v1033 = vpop.xlane.xlu0 %1032
      %1034 = vadd.xlane.f32.xlu0 %v1003
      %v1035 = vpop.xlane.xlu0 %1034
      %1036 = vadd.xlane.f32.xlu0 %v1005
      %v1037 = vpop.xlane.xlu0 %1036
      %1038 = vadd.xlane.f32.xlu0 %v1007
      %v1039 = vpop.xlane.xlu0 %1038
      %1040 = vadd.xlane.f32.xlu0 %v1009
      %v1041 = vpop.xlane.xlu0 %1040
      %1042 = vadd.xlane.f32.xlu0 %v1011
      %v1043 = vpop.xlane.xlu0 %1042
      %1044 = vadd.xlane.f32.xlu0 %v1013
      %v1045 = vpop.xlane.xlu0 %1044
      %1046 = vadd.xlane.f32.xlu0 %v1015
      %v1047 = vpop.xlane.xlu0 %1046
      %1048 = vadd.xlane.f32.xlu0 %v1017
      %v1049 = vpop.xlane.xlu0 %1048
      %1050 = vadd.xlane.f32.xlu0 %v1019
      %v1051 = vpop.xlane.xlu0 %1050
      %1052 = vadd.xlane.f32.xlu0 %v1021
      %v1053 = vpop.xlane.xlu0 %1052
      %1054 = vadd.xlane.f32.xlu0 %v1023
      %v1055 = vpop.xlane.xlu0 %1054
      %v1056 = vrcp.pop %v1025
      %v1057 = vrcp.pop %v1027
      %v1058 = vrcp.pop %v1029
      %v1059 = vrcp.pop %v1031
      %v1060 = vrcp.pop %v1033
      %v1061 = vrcp.pop %v1035
      %v1062 = vrcp.pop %v1037
      %v1063 = vrcp.pop %v1039
      %v1064 = vrcp.pop %v1041
      %v1065 = vrcp.pop %v1043
      %v1066 = vrcp.pop %v1045
      %v1067 = vrcp.pop %v1047
      %v1068 = vrcp.pop %v1049
      %v1069 = vrcp.pop %v1051
      %v1070 = vrcp.pop %v1053
      %v1071 = vrcp.pop %v1055
      %v1072 = vmul.f32 %v993, %v1056
      %v1073 = vmul.f32 %v995, %v1057
      %v1074 = vmul.f32 %v997, %v1058
      %v1075 = vmul.f32 %v999, %v1059
      %v1076 = vmul.f32 %v1001, %v1060
      %v1077 = vmul.f32 %v1003, %v1061
      %v1078 = vmul.f32 %v1005, %v1062
      %v1079 = vmul.f32 %v1007, %v1063
      %v1080 = vmul.f32 %v1009, %v1064
      %v1081 = vmul.f32 %v1011, %v1065
      %v1082 = vmul.f32 %v1013, %v1066
      %v1083 = vmul.f32 %v1015, %v1067
      %v1084 = vmul.f32 %v1017, %v1068
      %v1085 = vmul.f32 %v1019, %v1069
      %v1086 = vmul.f32 %v1021, %v1070
      %v1087 = vmul.f32 %v1023, %v1071
      %v1088 = vsel %vm912, %v1072, 0.0
      %v1089 = vsel %vm913, %v1073, 0.0
      %v1090 = vsel %vm914, %v1074, 0.0
      %v1091 = vsel %vm915, %v1075, 0.0
      %v1092 = vsel %vm916, %v1076, 0.0
      %v1093 = vsel %vm917, %v1077, 0.0
      %v1094 = vsel %vm918, %v1078, 0.0
      %v1095 = vsel %vm919, %v1079, 0.0
      %v1096 = vsel %vm920, %v1080, 0.0
      %v1097 = vsel %vm921, %v1081, 0.0
      %v1098 = vsel %vm922, %v1082, 0.0
      %v1099 = vsel %vm923, %v1083, 0.0
      %v1100 = vsel %vm924, %v1084, 0.0
      %v1101 = vsel %vm925, %v1085, 0.0
      %v1102 = vsel %vm926, %v1086, 0.0
      %v1103 = vsel %vm927, %v1087, 0.0
      %1104 = vmatprep.subr.mxu0 0.0
      %1105 = vmatpush1.msra.mxu0 %v531
      %1106 = vmatprep.subr.mxu0 0.0
      %1107 = vmatpush1.msra.mxu0 %v536
      %1108 = vmatprep.subr.mxu0 0.0
      %1109 = vmatpush1.msra.mxu0 %v541
      %1110 = vmatprep.subr.mxu0 0.0
      %1111 = vmatpush1.msra.mxu0 %v546
      %1112 = vmatprep.subr.mxu0 0.0
      %1113 = vmatpush1.msra.mxu0 %v551
      %1114 = vmatprep.subr.mxu0 0.0
      %1115 = vmatpush1.msra.mxu0 %v556
      %1116 = vmatprep.subr.mxu0 0.0
      %1117 = vmatpush1.msra.mxu0 %v561
      %1118 = vmatprep.subr.mxu0 0.0
      %1119 = vmatpush1.msra.mxu0 %v566
      %1120 = vmatprep.subr.mxu0 0.0
      %1121 = vmatpush1.msra.mxu0 %v571
      %1122 = vmatprep.subr.mxu0 0.0
      %1123 = vmatpush1.msra.mxu0 %v576
      %1124 = vmatprep.subr.mxu0 0.0
      %1125 = vmatpush1.msra.mxu0 %v581
      %1126 = vmatprep.subr.mxu0 0.0
      %1127 = vmatpush1.msra.mxu0 %v586
      %1128 = vmatprep.subr.mxu0 0.0
      %1129 = vmatpush1.msra.mxu0 %v591
      %1130 = vmatprep.subr.mxu0 0.0
      %1131 = vmatpush1.msra.mxu0 %v596
      %1132 = vmatprep.subr.mxu0 0.0
      %1133 = vmatpush1.msra.mxu0 %v601
      %1134 = vmatprep.subr.mxu0 0.0
      %1135 = vmatpush1.msra.mxu0 %v606
      %1136 = vmatprep.subr.mxu0 0.0
      %1137 = vmatpush1.msra.mxu0 0.0
      %1138 = vmatprep.subr.mxu0 0.0
      %1139 = vmatpush1.msra.mxu0 0.0
      %1140 = vmatprep.subr.mxu0 0.0
      %1141 = vmatpush1.msra.mxu0 0.0
      %1142 = vmatprep.subr.mxu0 0.0
      %1143 = vmatpush1.msra.mxu0 0.0
      %1144 = vmatprep.subr.mxu0 0.0
      %1145 = vmatpush1.msra.mxu0 0.0
      %1146 = vmatprep.subr.mxu0 0.0
      %1147 = vmatpush1.msra.mxu0 0.0
      %1148 = vmatprep.subr.mxu0 0.0
      %1149 = vmatpush1.msra.mxu0 0.0
      %1150 = vmatprep.subr.mxu0 0.0
      %1151 = vmatpush1.msra.mxu0 0.0
      %1152 = vmatprep.subr.mxu0 0.0
      %1153 = vmatpush1.msra.mxu0 0.0
      %1154 = vmatprep.subr.mxu0 0.0
      %1155 = vmatpush1.msra.mxu0 0.0
      %1156 = vmatprep.subr.mxu0 0.0
      %1157 = vmatpush1.msra.mxu0 0.0
      %1158 = vmatprep.subr.mxu0 0.0
      %1159 = vmatpush1.msra.mxu0 0.0
      %1160 = vmatprep.subr.mxu0 0.0
      %1161 = vmatpush1.msra.mxu0 0.0
      %1162 = vmatprep.subr.mxu0 0.0
      %1163 = vmatpush1.msra.mxu0 0.0
      %1164 = vmatprep.subr.mxu0 0.0
      %1165 = vmatpush1.msra.mxu0 0.0
      %1166 = vmatprep.subr.mxu0 0.0
      %1167 = vmatpush1.msra.mxu0 0.0
      %1168 = vmatprep.mubr.f32.mxu0 0.0
      %1169 = vmatmul.mubr.f32.gmra.mrb[0].mxu0 %v1088
      %v1170 = vpop.f32.mrb[0].mxu0
      %v1171 = vadd.f32 0.0, %v1170
      %v1172 = vpop.f32.mrb[0].mxu0
      %1173 = vmatprep.mubr.f32.mxu0 0.0
      %1174 = vmatmul.mubr.f32.gmra.mrb[0].mxu0 %v1089
      %v1175 = vpop.f32.mrb[0].mxu0
      %v1176 = vadd.f32 0.0, %v1175
      %v1177 = vpop.f32.mrb[0].mxu0
      %1178 = vmatprep.mubr.f32.mxu0 0.0
      %1179 = vmatmul.mubr.f32.gmra.mrb[0].mxu0 %v1090
      %v1180 = vpop.f32.mrb[0].mxu0
      %v1181 = vadd.f32 0.0, %v1180
      %v1182 = vpop.f32.mrb[0].mxu0
      %1183 = vmatprep.mubr.f32.mxu0 0.0
      %1184 = vmatmul.mubr.f32.gmra.mrb[0].mxu0 %v1091
      %v1185 = vpop.f32.mrb[0].mxu0
      %v1186 = vadd.f32 0.0, %v1185
      %v1187 = vpop.f32.mrb[0].mxu0
      %1188 = vmatprep.mubr.f32.mxu0 0.0
      %1189 = vmatmul.mubr.f32.gmra.mrb[0].mxu0 %v1092
      %v1190 = vpop.f32.mrb[0].mxu0
      %v1191 = vadd.f32 0.0, %v1190
      %v1192 = vpop.f32.mrb[0].mxu0
      %1193 = vmatprep.mubr.f32.mxu0 0.0
      %1194 = vmatmul.mubr.f32.gmra.mrb[0].mxu0 %v1093
      %v1195 = vpop.f32.mrb[0].mxu0
      %v1196 = vadd.f32 0.0, %v1195
      %v1197 = vpop.f32.mrb[0].mxu0
      %1198 = vmatprep.mubr.f32.mxu0 0.0
      %1199 = vmatmul.mubr.f32.gmra.mrb[0].mxu0 %v1094
      %v1200 = vpop.f32.mrb[0].mxu0
      %v1201 = vadd.f32 0.0, %v1200
      %v1202 = vpop.f32.mrb[0].mxu0
      %1203 = vmatprep.mubr.f32.mxu0 0.0
      %1204 = vmatmul.mubr.f32.gmra.mrb[0].mxu0 %v1095
      %v1205 = vpop.f32.mrb[0].mxu0
      %v1206 = vadd.f32 0.0, %v1205
      %v1207 = vpop.f32.mrb[0].mxu0
      %1208 = vmatprep.mubr.f32.mxu0 0.0
      %1209 = vmatmul.mubr.f32.gmra.mrb[0].mxu0 %v1096
      %v1210 = vpop.f32.mrb[0].mxu0
      %v1211 = vadd.f32 0.0, %v1210
      %v1212 = vpop.f32.mrb[0].mxu0
      %1213 = vmatprep.mubr.f32.mxu0 0.0
      %1214 = vmatmul.mubr.f32.gmra.mrb[0].mxu0 %v1097
      %v1215 = vpop.f32.mrb[0].mxu0
      %v1216 = vadd.f32 0.0, %v1215
      %v1217 = vpop.f32.mrb[0].mxu0
      %1218 = vmatprep.mubr.f32.mxu0 0.0
      %1219 = vmatmul.mubr.f32.gmra.mrb[0].mxu0 %v1098
      %v1220 = vpop.f32.mrb[0].mxu0
      %v1221 = vadd.f32 0.0, %v1220
      %v1222 = vpop.f32.mrb[0].mxu0
      %1223 = vmatprep.mubr.f32.mxu0 0.0
      %1224 = vmatmul.mubr.f32.gmra.mrb[0].mxu0 %v1099
      %v1225 = vpop.f32.mrb[0].mxu0
      %v1226 = vadd.f32 0.0, %v1225
      %v1227 = vpop.f32.mrb[0].mxu0
      %1228 = vmatprep.mubr.f32.mxu0 0.0
      %1229 = vmatmul.mubr.f32.gmra.mrb[0].mxu0 %v1100
      %v1230 = vpop.f32.mrb[0].mxu0
      %v1231 = vadd.f32 0.0, %v1230
      %v1232 = vpop.f32.mrb[0].mxu0
      %1233 = vmatprep.mubr.f32.mxu0 0.0
      %1234 = vmatmul.mubr.f32.gmra.mrb[0].mxu0 %v1101
      %v1235 = vpop.f32.mrb[0].mxu0
      %v1236 = vadd.f32 0.0, %v1235
      %v1237 = vpop.f32.mrb[0].mxu0
      %1238 = vmatprep.mubr.f32.mxu0 0.0
      %1239 = vmatmul.mubr.f32.gmra.mrb[0].mxu0 %v1102
      %v1240 = vpop.f32.mrb[0].mxu0
      %v1241 = vadd.f32 0.0, %v1240
      %v1242 = vpop.f32.mrb[0].mxu0
      %1243 = vmatprep.mubr.f32.mxu0 0.0
      %1244 = vmatmul.mubr.f32.gmra.mrb[0].mxu0 %v1103
      %v1245 = vpop.f32.mrb[0].mxu0
      %v1246 = vadd.f32 0.0, %v1245
      %v1247 = vpop.f32.mrb[0].mxu0
      %1248 = vdwg.mxu0
      %1249 = vst [vmem:[%s213] sm:$0xff] %v1171
      %1250 = vst [vmem:[%s213 + $0x8] sm:$0xff] %v1176
      %1251 = vst [vmem:[%s213 + $0x10] sm:$0xff] %v1181
      %1252 = vst [vmem:[%s213 + $0x18] sm:$0xff] %v1186
      %1253 = vst [vmem:[%s213 + $0x20] sm:$0xff] %v1191
      %1254 = vst [vmem:[%s213 + $0x28] sm:$0xff] %v1196
      %1255 = vst [vmem:[%s213 + $0x30] sm:$0xff] %v1201
      %1256 = vst [vmem:[%s213 + $0x38] sm:$0xff] %v1206
      %1257 = vst [vmem:[%s213 + $0x40] sm:$0xff] %v1211
      %1258 = vst [vmem:[%s213 + $0x48] sm:$0xff] %v1216
      %1259 = vst [vmem:[%s213 + $0x50] sm:$0xff] %v1221
      %1260 = vst [vmem:[%s213 + $0x58] sm:$0xff] %v1226
      %1261 = vst [vmem:[%s213 + $0x60] sm:$0xff] %v1231
      %1262 = vst [vmem:[%s213 + $0x68] sm:$0xff] %v1236
      %1263 = vst [vmem:[%s213 + $0x70] sm:$0xff] %v1241
      %1264 = vst [vmem:[%s213 + $0x78] sm:$0xff] %v1246
      %s1265 = smul.u32 16, %s15
      %p1266 = scmp.lt.s32.totalorder %s1265, 31
      %s1267 = scalar_select %p1266, %s1265, 31
      %s1268 = smul.addr %s1267, 8
      %s1269 = scalar_lea.vmem %s4, %s1268
      // Predicated region
      $region37: #{self_attention_fc.1} parent=35 // pred_check
        %p1270 = pneg %p127
      $region38: #{self_attention_fc.1} parent=35 // pred_check_branch
        %1272 = sbr.rel (%p1270) target = $region40
      $region39: #{self_attention_fc.1} parent=35 // pred_region
        %s1273 = smul.u32 16, %s15
      $region40: #{self_attention_fc.1} parent=35 // pred_fallthru
        _
    $region36: #{self_attention_fc.1} parent=5 // pred_fallthru
      _
    %p1274 = scmp.le.s32.totalorder 2, %s10
    // Predicated region
    $region41: #{self_attention_fc.1} parent=5 // pred_check
      %p1275 = pneg %p1274
    $region42: #{self_attention_fc.1} parent=5 // pred_check_branch
      %1277 = sbr.rel (%p1275) target = $region44
    $region43: #{self_attention_fc.1} parent=5 // pred_region
      %s1278 = ssub.s32 %s10, 2
      // Predicated region
      $region45: #{self_attention_fc.1} parent=43 // pred_check
        %p1279 = pneg %p133
      $region46: #{self_attention_fc.1} parent=43 // pred_check_branch
        %1281 = sbr.rel (%p1279) target = $region48
      $region47: #{self_attention_fc.1} parent=43 // pred_region
        %s1282 = smul.u32 16, %s16
        %p1283 = scmp.lt.s32.totalorder %s1282, 31
        %s1284 = scalar_select %p1283, %s1282, 31
        %s1285 = smul.addr %s1284, 8
        %s1286 = scalar_lea.vmem %s4, %s1285
      $region48: #{self_attention_fc.1} parent=43 // pred_fallthru
        _
    $region44: #{self_attention_fc.1} parent=5 // pred_fallthru
      _
  $region6: #{self_attention_fc.1} parent=0 // loop_footer
    %s14 = sadd.s32 1, %s10
  $region7: #{self_attention_fc.1} parent=0 // loop_footer_branch
    %9 = sbr.rel target = $region3
  $region8: #{self_attention_fc.1} parent=0 // loop_exit
    _

</llo_original>
